<compile_context>
chip_gen: v7x
topology: tpu7x:2x2x1
jax: 0.10.0
libtpu: 0.0.40
codegen_flags: <defaults>
</compile_context>

<pallas_src>
import functools
import math

import jax
import jax.numpy as jnp
from jax import lax
from jax.experimental import pallas as pl
from jax.experimental.pallas import tpu as pltpu

EPS = 1e-5
_TARGET_BLOCK_BYTES = 2 * 1024 * 1024     # ~2 MB pipelined blocks
_VMEM_LIMIT_BYTES = 48 * 1024 * 1024      # safe on v5e/v6e (128 MiB) and v7x (64 MiB)


def _choose_ct(span, full_dim, must_divide, hw, itemsize, nb, target):
    """Largest channel tile ct such that:
         ct | span, ct | must_divide, (ct == full_dim or ct % 8 == 0),
         nb * ct * hw * itemsize <= target  (else smallest legal ct).
       Returns None if no legal tile exists."""
    legal = [ct for ct in range(1, span + 1)
             if span % ct == 0 and must_divide % ct == 0
             and (ct == full_dim or ct % 8 == 0)]
    if not legal:
        return None
    fitting = [ct for ct in legal if nb * ct * hw * itemsize <= target]
    return max(fitting) if fitting else min(legal)


def _bn_stats_kernel(x_ref, sum_ref, sq_ref):
    """Accumulate per-channel sum / sum-of-squares across the batch axis.

    Grid: (split, channel_block, batch_block). The batch axis (last) is the
    reduction axis; each (split, channel_block) owns a resident accumulator.
    """
    @pl.when(pl.program_id(2) == 0)
    def _():
        sum_ref[...] = jnp.zeros_like(sum_ref)
        sq_ref[...] = jnp.zeros_like(sq_ref)

    x = x_ref[...].astype(jnp.float32)                       # (Nb, Ct, HW)
    s = jnp.sum(x, axis=-1, keepdims=True)                   # (Nb, Ct, 1)
    q = jnp.sum(x * x, axis=-1, keepdims=True)
    sum_ref[...] += jnp.sum(s, axis=0, keepdims=True)        # (1, Ct, 1)
    sq_ref[...] += jnp.sum(q, axis=0, keepdims=True)


def _apply_kernel(x_ref, scale_ref, shift_ref, o_ref, *, half, ct, inv_hw):
    """Fused per-sample apply.

    Channels [0, half): InstanceNorm — per-(n, c) stats over HW computed here
                        with one-pass E[x^2]-mean^2 (no full-tile temporary).
    Channels [half, C): BatchNorm    — scale/shift precomputed from batch stats.
    """
    # TODO(synk): a bf16 apply path (f32 only for the HW sums) would further halve
    # the in-VMEM temporary footprint for bf16 inputs on v6e/v7x.
    x = x_ref[...].astype(jnp.float32)                       # (Nb, Ct, HW)
    mean = jnp.sum(x, axis=-1, keepdims=True) * inv_hw       # (Nb, Ct, 1)
    msq = jnp.sum(x * x, axis=-1, keepdims=True) * inv_hw
    var = jnp.maximum(msq - mean * mean, 0.0)
    inv = lax.rsqrt(var + EPS)

    sp = scale_ref[...].astype(jnp.float32)[None]            # (1, Ct, 1)
    hp = shift_ref[...].astype(jnp.float32)[None]

    j = pl.program_id(1)                                     # channel block index
    ch = lax.broadcasted_iota(jnp.int32, (ct, 1), 0) + j * ct
    is_in = (ch < half)[None]                                # (1, Ct, 1)

    in_scale = sp * inv                                      # (Nb, Ct, 1)
    scale = jnp.where(is_in, in_scale, sp)
    shift = jnp.where(is_in, hp - mean * in_scale, hp)
    o_ref[...] = (x * scale + shift).astype(o_ref.dtype)


def ibn_forward(x, in_gamma, in_beta, bn_gamma, bn_beta, half):
    """IBN forward: channels [:half] -> InstanceNorm2d(affine), [half:] -> BatchNorm2d (batch stats)."""
    N, C, H, W = x.shape
    assert 0 < half < C, "IBN expects both an IN and a BN channel group"
    HW = H * W
    bn_c = C - half
    itemsize = x.dtype.itemsize
    x3 = x.reshape(N, C, HW)   # contiguous merge of (H, W): free, no HBM traffic

    # ---- tile selection ----------------------------------------------------
    base_bytes = C * HW * itemsize
    nb = 1
    if base_bytes <= _TARGET_BLOCK_BYTES:
        for cand in range(N, 0, -1):          # batch several samples per block
            if N % cand == 0 and cand * base_bytes <= _TARGET_BLOCK_BYTES:
                nb = cand
                break
    # Pass-2 channel tile (must divide C; multiple of 8 unless it is C itself).
    ct2 = C if nb > 1 else _choose_ct(C, C, C, HW, itemsize, nb, _TARGET_BLOCK_BYTES)
    # Pass-1 channel tile: read only the BN half when the split is 8-aligned.
    ct1 = _choose_ct(bn_c, C, math.gcd(half, bn_c), HW, itemsize, nb,
                     _TARGET_BLOCK_BYTES)
    if ct1 is not None:
        c_span1, c_off_blk = bn_c, half // ct1
    else:   # odd channel split: fall back to reading all channels in pass 1
        ct1 = _choose_ct(C, C, C, HW, itemsize, nb, _TARGET_BLOCK_BYTES)
        c_span1, c_off_blk = C, 0

    n_blocks = N // nb
    n_split = 2 if (n_blocks % 2 == 0 and n_blocks >= 2) else 1
    nb_per_split = n_blocks // n_split

    # ---- Pass 1: per-channel batch statistics over the BN half only --------
    sum_p, sq_p = pl.pallas_call(
        _bn_stats_kernel,
        out_shape=(
            jax.ShapeDtypeStruct((n_split, c_span1, 1), jnp.float32),
            jax.ShapeDtypeStruct((n_split, c_span1, 1), jnp.float32),
        ),
        grid=(n_split, c_span1 // ct1, nb_per_split),
        in_specs=[pl.BlockSpec(
            (nb, ct1, HW),
            lambda s, j, n: (s * nb_per_split + n, j + c_off_blk, 0))],
        out_specs=(
            pl.BlockSpec((1, ct1, 1), lambda s, j, n: (s, j, 0)),
            pl.BlockSpec((1, ct1, 1), lambda s, j, n: (s, j, 0)),
        ),
        compiler_params=pltpu.CompilerParams(
            dimension_semantics=("parallel", "parallel", "arbitrary"),
            vmem_limit_bytes=_VMEM_LIMIT_BYTES),
    )(x3)

    count = jnp.float32(N * HW)
    ch_sum = jnp.sum(sum_p, axis=0)[:, 0]                    # (c_span1,)
    ch_sq = jnp.sum(sq_p, axis=0)[:, 0]
    mean_b = ch_sum / count
    var_b = jnp.maximum(ch_sq / count - mean_b * mean_b, 0.0)
    if c_span1 == C:                                         # fallback path only
        mean_b, var_b = mean_b[half:], var_b[half:]

    # Tiny (C,)-sized parameter prep in plain JAX (negligible cost).
    bn_scale = bn_gamma.astype(jnp.float32) * lax.rsqrt(var_b + EPS)
    bn_shift = bn_beta.astype(jnp.float32) - mean_b * bn_scale
    scale_param = jnp.concatenate([in_gamma.astype(jnp.float32), bn_scale]).reshape(C, 1)
    shift_param = jnp.concatenate([in_beta.astype(jnp.float32), bn_shift]).reshape(C, 1)

    # ---- Pass 2: fused IN/BN apply, one lane-dense output, no slices/concat ----
    y3 = pl.pallas_call(
        functools.partial(_apply_kernel, half=half, ct=ct2, inv_hw=1.0 / HW),
        out_shape=jax.ShapeDtypeStruct((N, C, HW), x.dtype),
        grid=(N // nb, C // ct2),
        in_specs=[
            pl.BlockSpec((nb, ct2, HW), lambda n, j: (n, j, 0)),
            pl.BlockSpec((ct2, 1), lambda n, j: (j, 0)),
            pl.BlockSpec((ct2, 1), lambda n, j: (j, 0)),
        ],
        out_specs=pl.BlockSpec((nb, ct2, HW), lambda n, j: (n, j, 0)),
        compiler_params=pltpu.CompilerParams(
            dimension_semantics=("parallel", "parallel"),
            vmem_limit_bytes=_VMEM_LIMIT_BYTES),
    )(x3, scale_param, shift_param)

    return y3.reshape(N, C, H, W)


def _reference_ibn(x, in_gamma, in_beta, bn_gamma, bn_beta, half):
    x1 = x[:, :half]
    m1 = x1.mean(axis=(2, 3), keepdims=True)
    v1 = x1.var(axis=(2, 3), keepdims=True)
    o1 = (x1 - m1) / jnp.sqrt(v1 + EPS) * in_gamma[None, :, None, None] + in_beta[None, :, None, None]
    x2 = x[:, half:]
    m2 = x2.mean(axis=(0, 2, 3), keepdims=True)
    v2 = x2.var(axis=(0, 2, 3), keepdims=True)
    o2 = (x2 - m2) / jnp.sqrt(v2 + EPS) * bn_gamma[None, :, None, None] + bn_beta[None, :, None, None]
    return jnp.concatenate([o1, o2], axis=1)


if __name__ == "__main__":
    key = jax.random.PRNGKey(0)
    N, C, H, W = 2, 16, 16, 16         # planes = 16
    ratio = 0.5
    half = int(C * ratio)              # IN on first `half` channels, BN on the rest

    k_x, k_ig, k_ib, k_bg, k_bb = jax.random.split(key, 5)
    x = jax.random.normal(k_x, (N, C, H, W), dtype=jnp.float32)
    # Deterministic (non-trivial) affine parameters; PyTorch default would be ones/zeros.
    in_gamma = 1.0 + 0.1 * jax.random.normal(k_ig, (half,), dtype=jnp.float32)
    in_beta = 0.1 * jax.random.normal(k_ib, (half,), dtype=jnp.float32)
    bn_gamma = 1.0 + 0.1 * jax.random.normal(k_bg, (C - half,), dtype=jnp.float32)
    bn_beta = 0.1 * jax.random.normal(k_bb, (C - half,), dtype=jnp.float32)

    out = jax.block_until_ready(
        ibn_forward(x, in_gamma, in_beta, bn_gamma, bn_beta, half))
    ref = _reference_ibn(x, in_gamma, in_beta, bn_gamma, bn_beta, half)
    assert out.shape == (N, C, H, W)
    assert jnp.allclose(out, ref, atol=1e-4, rtol=1e-4), float(jnp.max(jnp.abs(out - ref)))

    # TODO(synk): BatchNorm running_mean/running_var momentum buffer updates (a
    # training-time side effect, not part of the returned tensor) are not emitted;
    # eval-mode BN (using running stats) is likewise not supported.

    print("KERNEL_OK")
</pallas_src>

<mosaic_0001>
module attributes {stable_mosaic.version = 11 : i64} {
  func.func @_bn_stats_kernel(%arg0: i32, %arg1: i32, %arg2: i32, %arg3: memref<2x8x256xf32, #tpu.memory_space<vmem>>, %arg4: memref<1x8x1xf32, #tpu.memory_space<vmem>>, %arg5: memref<1x8x1xf32, #tpu.memory_space<vmem>>) attributes {dimension_semantics = [#tpu.dimension_semantics<parallel>, #tpu.dimension_semantics<parallel>, #tpu.dimension_semantics<arbitrary>], iteration_bounds = array<i64: 1, 1, 1>, scalar_prefetch = 0 : i64, scratch_operands = 0 : i64, tpu.core_type = #tpu.core_type<tc>, window_params = [{transform_indices = @transform_0, window_bounds = array<i64: 2, 8, 256>}, {transform_indices = @transform_1, window_bounds = array<i64: 1, 8, 1>}, {transform_indices = @transform_2, window_bounds = array<i64: 1, 8, 1>}]} {
    %c0_i32 = arith.constant 0 : i32
    %0 = arith.cmpi eq, %arg2, %c0_i32 : i32
    %1 = arith.extui %0 : i1 to i32
    %c0_i32_0 = arith.constant 0 : i32
    %2 = arith.cmpi ne, %1, %c0_i32_0 : i32
    scf.if %2 {
      %cst_18 = arith.constant 0.000000e+00 : f32
      %19 = vector.broadcast %cst_18 : f32 to vector<1x8x1xf32>
      %c0_19 = arith.constant 0 : index
      %c0_20 = arith.constant 0 : index
      %c0_21 = arith.constant 0 : index
      %20 = vector.load %arg4[%c0_19, %c0_20, %c0_21] : memref<1x8x1xf32, #tpu.memory_space<vmem>>, vector<1x8x1xf32>
      tpu.vector_store %arg4[%c0_19, %c0_20, %c0_21], %19 {strides = array<i32>} : memref<1x8x1xf32, #tpu.memory_space<vmem>>, vector<1x8x1xf32>,
      %cst_22 = arith.constant 0.000000e+00 : f32
      %21 = vector.broadcast %cst_22 : f32 to vector<1x8x1xf32>
      %c0_23 = arith.constant 0 : index
      %c0_24 = arith.constant 0 : index
      %c0_25 = arith.constant 0 : index
      %22 = vector.load %arg5[%c0_23, %c0_24, %c0_25] : memref<1x8x1xf32, #tpu.memory_space<vmem>>, vector<1x8x1xf32>
      tpu.vector_store %arg5[%c0_23, %c0_24, %c0_25], %21 {strides = array<i32>} : memref<1x8x1xf32, #tpu.memory_space<vmem>>, vector<1x8x1xf32>,
    } else {
    }
    %c0 = arith.constant 0 : index
    %c0_1 = arith.constant 0 : index
    %c0_2 = arith.constant 0 : index
    %3 = vector.load %arg3[%c0, %c0_1, %c0_2] : memref<2x8x256xf32, #tpu.memory_space<vmem>>, vector<2x8x256xf32>
    %cst = arith.constant dense<0.000000e+00> : vector<2x8xf32>
    %4 = vector.multi_reduction <add>, %3, %cst [2] : vector<2x8x256xf32> to vector<2x8xf32>
    %5 = vector.shape_cast %4 : vector<2x8xf32> to vector<2x8x1xf32>
    %6 = arith.mulf %3, %3 : vector<2x8x256xf32>
    %cst_3 = arith.constant dense<0.000000e+00> : vector<2x8xf32>
    %7 = vector.multi_reduction <add>, %6, %cst_3 [2] : vector<2x8x256xf32> to vector<2x8xf32>
    %8 = vector.shape_cast %7 : vector<2x8xf32> to vector<2x8x1xf32>
    %c0_4 = arith.constant 0 : index
    %c0_5 = arith.constant 0 : index
    %c0_6 = arith.constant 0 : index
    %9 = vector.load %arg4[%c0_4, %c0_5, %c0_6] : memref<1x8x1xf32, #tpu.memory_space<vmem>>, vector<1x8x1xf32>
    %cst_7 = arith.constant dense<0.000000e+00> : vector<8x1xf32>
    %10 = vector.multi_reduction <add>, %5, %cst_7 [0] : vector<2x8x1xf32> to vector<8x1xf32>
    %11 = vector.shape_cast %10 : vector<8x1xf32> to vector<1x8x1xf32>
    %12 = arith.addf %9, %11 : vector<1x8x1xf32>
    %c0_8 = arith.constant 0 : index
    %c0_9 = arith.constant 0 : index
    %c0_10 = arith.constant 0 : index
    %13 = vector.load %arg4[%c0_8, %c0_9, %c0_10] : memref<1x8x1xf32, #tpu.memory_space<vmem>>, vector<1x8x1xf32>
    tpu.vector_store %arg4[%c0_8, %c0_9, %c0_10], %12 {strides = array<i32>} : memref<1x8x1xf32, #tpu.memory_space<vmem>>, vector<1x8x1xf32>,
    %c0_11 = arith.constant 0 : index
    %c0_12 = arith.constant 0 : index
    %c0_13 = arith.constant 0 : index
    %14 = vector.load %arg5[%c0_11, %c0_12, %c0_13] : memref<1x8x1xf32, #tpu.memory_space<vmem>>, vector<1x8x1xf32>
    %cst_14 = arith.constant dense<0.000000e+00> : vector<8x1xf32>
    %15 = vector.multi_reduction <add>, %8, %cst_14 [0] : vector<2x8x1xf32> to vector<8x1xf32>
    %16 = vector.shape_cast %15 : vector<8x1xf32> to vector<1x8x1xf32>
    %17 = arith.addf %14, %16 : vector<1x8x1xf32>
    %c0_15 = arith.constant 0 : index
    %c0_16 = arith.constant 0 : index
    %c0_17 = arith.constant 0 : index
    %18 = vector.load %arg5[%c0_15, %c0_16, %c0_17] : memref<1x8x1xf32, #tpu.memory_space<vmem>>, vector<1x8x1xf32>
    tpu.vector_store %arg5[%c0_15, %c0_16, %c0_17], %17 {strides = array<i32>} : memref<1x8x1xf32, #tpu.memory_space<vmem>>, vector<1x8x1xf32>,
    return
  }
  func.func @transform_0(%arg0: i32, %arg1: i32, %arg2: i32) -> (i32, i32, i32) {
    %c1_i32 = arith.constant 1 : i32
    %0 = arith.muli %arg0, %c1_i32 : i32
    %1 = arith.addi %0, %arg2 : i32
    %c1_i32_0 = arith.constant 1 : i32
    %2 = arith.addi %arg1, %c1_i32_0 : i32
    %c0_i32 = arith.constant 0 : i32
    %c0_i32_1 = arith.constant 0 : i32
    return %1, %2, %c0_i32 : i32, i32, i32
  }
  func.func @transform_1(%arg0: i32, %arg1: i32, %arg2: i32) -> (i32, i32, i32) {
    %c0_i32 = arith.constant 0 : i32
    %c0_i32_0 = arith.constant 0 : i32
    return %arg0, %arg1, %c0_i32 : i32, i32, i32
  }
  func.func @transform_2(%arg0: i32, %arg1: i32, %arg2: i32) -> (i32, i32, i32) {
    %c0_i32 = arith.constant 0 : i32
    %c0_i32_0 = arith.constant 0 : i32
    return %arg0, %arg1, %c0_i32 : i32, i32, i32
  }
}

</mosaic_0001>

<llo_original>
// kernel: tpu_custom_call.1
$region0: #{tpu_custom_call.1}
  #allocation0 [shape = 'u32[]', space=smem, size = 0x4, offset = 0x4, fixed_abs, tag = 'smem constant byte address 0x4 - core index']
  #allocation1 [shape = 'u32[144,128]{1,0:T(1,128)}', space=vmem, size = 0x12000, scoped, tag = 'internal scratch']
  %s0 = inlined_call_operand.hbm [shape: f32[2,16,256], index: 0, kind: input, shape index: {}]
  %s1 = inlined_call_operand.vmem [shape: f32[1,8,1], index: 1, kind: output, shape index: {0}]
  %s2 = inlined_call_operand.vmem [shape: f32[1,8,1], index: 2, kind: output, shape index: {1}]
  %3 = xla_tuple %s1, %s2
  %s4 = sld [smem:[#allocation0]]
  $region30: #{tpu_custom_call.1} parent=0
    _
  %s6 = ssub.s32 1, %s4
  %s7 = scalar_select 0, %s6, %s4
  $region1: #{tpu_custom_call.1} parent=0
    #allocation2 [shape = 'u8[16384]{0}', space=vmem, size = 0x4000, scoped, tag = 'input window, operand 0, single buffered']
    #allocation3 [shape = 's32[1]{0}', space=sflag, size = 0x4, scoped, tag = 'scoped memory for tpu_custom_call.1']
    %8 = vsyncpa [#allocation3], 0
    // Predicated region
    $region2: #{tpu_custom_call.1} parent=1 // pred_check
      _
    $region3: #{tpu_custom_call.1} parent=1 // pred_check_branch
      %10 = sbr.rel (0) target = $region5
    $region4: #{tpu_custom_call.1} parent=1 // pred_region
      %s11 = sadd.s32 0, 0
      %s12 = sadd.s32 0, 1
      %s13 = smul.u32 2, %s11
      %s15 = ssub.s32 512, 512
      %16 = vsyncadd [#allocation3], %s15
      %s17 = smul.addr %s12, 2
      %s18 = smul.addr %s13, 4
      %s19 = sadd.s32 %s17, %s18
      %s20 = smul.addr %s19, 128
      %s21 = scalar_lea.hbm %s0, %s20
      %s22 = sshll.u32 [#allocation2], 4
      %s23 = int_to_ptr.vmem [resolvable:$true] %s22
      %28 = dma.hbm_to_vmem [thread:$0]  %s21, 512, %s23, [#allocation3], 512, 256, 16
    $region5: #{tpu_custom_call.1} parent=1 // pred_fallthru
      _
    // Predicated region
    $region6: #{tpu_custom_call.1} parent=1 // pred_check
      _
    $region7: #{tpu_custom_call.1} parent=1 // pred_check_branch
      %30 = sbr.rel (0) target = $region9
    $region8: #{tpu_custom_call.1} parent=1 // pred_region
      %31 = dma.done [#allocation3], 512
    $region9: #{tpu_custom_call.1} parent=1 // pred_fallthru
      _
    %s32 = sadd.s32 0, 0
    %s33 = sadd.s32 0, 1
    %s34 = smul.u32 2, %s32
    %p35 = scmp.eq.s32.totalorder 0, 0
    // Predicated region
    $region10: #{tpu_custom_call.1} parent=1 // pred_check
      %p36 = pneg %p35
    $region11: #{tpu_custom_call.1} parent=1 // pred_check_branch
      %38 = sbr.rel (%p36) target = $region13
    $region12: #{tpu_custom_call.1} parent=1 // pred_region
      %vm39 = vcmask 7168
      %40 = vst.msk [vmem:[%s1] sm:$0xff] %vm39, 0.0
      %41 = vst.msk [vmem:[%s2] sm:$0xff] %vm39, 0.0
    $region13: #{tpu_custom_call.1} parent=1 // pred_fallthru
      _
    %v42 = vld [vmem:[#allocation2] sm:$0xff]
    %v43 = vld [vmem:[#allocation2 + $0x8] sm:$0xff]
    %v44 = vld [vmem:[#allocation2 + $0x10] sm:$0xff]
    %v45 = vld [vmem:[#allocation2 + $0x18] sm:$0xff]
    %v46 = vadd.f32 %v42, %v43
    %47 = vadd.xlane.f32.xlu0 %v46
    %v48 = vpop.xlane.xlu0 %47
    %v49 = vadd.f32 %v44, %v45
    %50 = vadd.xlane.f32.xlu0 %v49
    %v51 = vpop.xlane.xlu0 %50
    %v52 = vmul.f32 %v42, %v42
    %v53 = vmul.f32 %v43, %v43
    %v54 = vmul.f32 %v44, %v44
    %v55 = vmul.f32 %v45, %v45
    %v56 = vadd.f32 %v52, %v53
    %57 = vadd.xlane.f32.xlu0 %v56
    %v58 = vpop.xlane.xlu0 %57
    %v59 = vadd.f32 %v54, %v55
    %60 = vadd.xlane.f32.xlu0 %v59
    %v61 = vpop.xlane.xlu0 %60
    %v62 = vld [vmem:[%s1] sm:$0xff]
    %v63 = vadd.f32 %v48, %v51
    %v64 = vadd.f32 %v62, %v63
    %vm65 = vcmask 7168
    %66 = vst.msk [vmem:[%s1] sm:$0xff] %vm65, %v64
    %v67 = vld [vmem:[%s2] sm:$0xff]
    %v68 = vadd.f32 %v58, %v61
    %v69 = vadd.f32 %v67, %v68
    %70 = vst.msk [vmem:[%s2] sm:$0xff] %vm65, %v69
    // Predicated region
    $region14: #{tpu_custom_call.1} parent=1 // pred_check
      _
    $region15: #{tpu_custom_call.1} parent=1 // pred_check_branch
      %72 = sbr.rel (0) target = $region17
    $region16: #{tpu_custom_call.1} parent=1 // pred_region
      _
    $region17: #{tpu_custom_call.1} parent=1 // pred_fallthru
      _
    // Predicated region
    $region18: #{tpu_custom_call.1} parent=1 // pred_check
      _
    $region19: #{tpu_custom_call.1} parent=1 // pred_check_branch
      %74 = sbr.rel (0) target = $region21
    $region20: #{tpu_custom_call.1} parent=1 // pred_region
      _
    $region21: #{tpu_custom_call.1} parent=1 // pred_fallthru
      _
    // Predicated region
    $region22: #{tpu_custom_call.1} parent=1 // pred_check
      _
    $region23: #{tpu_custom_call.1} parent=1 // pred_check_branch
      %76 = sbr.rel (0) target = $region25
    $region24: #{tpu_custom_call.1} parent=1 // pred_region
      _
    $region25: #{tpu_custom_call.1} parent=1 // pred_fallthru
      _
    // Predicated region
    $region26: #{tpu_custom_call.1} parent=1 // pred_check
      _
    $region27: #{tpu_custom_call.1} parent=1 // pred_check_branch
      %78 = sbr.rel (0) target = $region29
    $region28: #{tpu_custom_call.1} parent=1 // pred_region
      _
    $region29: #{tpu_custom_call.1} parent=1 // pred_fallthru
      _
    %79 = vsyncpa [#allocation3], 1

</llo_original>
